<compile_context>
chip_gen: v7x
topology: tpu7x:2x2x1
jax: 0.10.0
libtpu: 0.0.40
codegen_flags: <defaults>
</compile_context>

<pallas_src>
import functools

import jax
import jax.numpy as jnp
from jax.experimental import pallas as pl
from jax.experimental.pallas import tpu as pltpu


# 32 MiB scoped VMEM is the default on v6e/v7x, safely below v7x's 64 MiB
# physical per-TC VMEM, and a safe raise over v5e's 16 MiB default (128 MiB
# physical).  ~24 MiB is budgeted for the double-buffered x/y blocks; the rest
# is headroom for the small (1, tile_d) rows and compiler scratch.
_VMEM_LIMIT = 32 * 1024 * 1024
_BUF_BUDGET = 24 * 1024 * 1024


# --------------------------------------------------------------------------
# Single-pass kernel: whole batch column resident, feature-tiled.
# --------------------------------------------------------------------------
def _batchnorm_kernel(x_ref, log_gamma_ref, beta_ref,
                      y_ref, ladj_ref, mean_ref, var_ref,
                      *, eps, inv_denom):
    # Block shapes: x/y -> (B, tile_d); params / stats / ladj -> (1, tile_d).
    x = x_ref[...].astype(jnp.float32)                      # (B, tile_d)

    mean = jnp.mean(x, axis=0, keepdims=True)               # (1, tile_d)
    diff = x - mean
    # torch.var(dim=0) default is unbiased -> divide by (B - 1).
    var = jnp.sum(diff * diff, axis=0, keepdims=True) * inv_denom

    inv_std = jax.lax.rsqrt(var + eps)                      # (1, tile_d)

    log_gamma = log_gamma_ref[...]                          # (1, tile_d) f32
    beta = beta_ref[...]                                    # (1, tile_d) f32

    y = jnp.exp(log_gamma) * (diff * inv_std) + beta        # (B, tile_d)
    y_ref[...] = y.astype(y_ref.dtype)

    ladj_ref[...] = (log_gamma - 0.5 * jnp.log(var + eps)).astype(ladj_ref.dtype)
    mean_ref[...] = mean.astype(mean_ref.dtype)
    var_ref[...] = var.astype(var_ref.dtype)


# --------------------------------------------------------------------------
# Two-pass kernels for large B (whole batch column does not fit VMEM).
# --------------------------------------------------------------------------
def _stats_kernel(x_ref, sum_ref, sumsq_ref, *, batch, tile_b):
    bi = pl.program_id(1)

    @pl.when(bi == 0)
    def _():
        sum_ref[...] = jnp.zeros_like(sum_ref)
        sumsq_ref[...] = jnp.zeros_like(sumsq_ref)

    x = x_ref[...].astype(jnp.float32)                      # (tile_b, tile_d)
    if batch % tile_b != 0:
        # Mask padded rows of the ragged last batch block.
        row = bi * tile_b + jax.lax.broadcasted_iota(jnp.int32, x.shape, 0)
        x = jnp.where(row < batch, x, 0.0)
    sum_ref[...] += jnp.sum(x, axis=0, keepdims=True)
    sumsq_ref[...] += jnp.sum(x * x, axis=0, keepdims=True)


def _apply_kernel(x_ref, scale_ref, shift_ref, y_ref):
    x = x_ref[...].astype(jnp.float32)                      # (tile_b, tile_d)
    y_ref[...] = (x * scale_ref[...] + shift_ref[...]).astype(y_ref.dtype)


# --------------------------------------------------------------------------
# Tile sizing.
# --------------------------------------------------------------------------
def _choose_tile_d(b, d, itemsize):
    """Feature-tile width for the single-pass kernel, or None -> two-pass path."""
    # Per lane of tile_d: x block + y block, each double-buffered, plus the
    # small (1, tile_d) param/stat rows.
    bytes_per_lane = 2 * 2 * b * itemsize + 2 * 8 * 4
    cap = _BUF_BUDGET // bytes_per_lane
    if cap < min(d, 128):
        return None                       # even a 128-lane column won't fit
    if d < 256:
        return d if cap >= d else 128
    # >= 2 feature tiles so both v7x TensorCores get work; lane-aligned.
    upper = min(cap, pl.cdiv(d, 2))
    upper = max(128, (upper // 128) * 128)
    for t in range(upper, 0, -128):       # prefer a tile that divides d exactly
        if d % t == 0:
            return t
    return upper


def _choose_two_pass_tiles(b, d, itemsize):
    # Feature tile: multiple of 128 (or the full feature dim when small).
    if d <= 512:
        tile_d = d
    else:
        tile_d = 512
        for t in (512, 384, 256, 128):
            if d % t == 0:
                tile_d = t
                break
    # Batch tile: multiple of 8 (or full B); sized so the apply pass's
    # double-buffered x + y blocks fit the budget.
    bytes_per_row = 2 * 2 * tile_d * itemsize
    tile_b = max((_BUF_BUDGET // bytes_per_row) // 8 * 8, 8)
    if tile_b >= b:
        tile_b = b
    return tile_b, tile_d


# --------------------------------------------------------------------------
# Wrapper: training-mode forward.
# --------------------------------------------------------------------------
def batchnorm_forward(x, log_gamma, beta, running_mean, running_var,
                      momentum=0.9, eps=1e-5, *,
                      force_two_pass=False, two_pass_tile_b=None):
    """Training-mode forward of the RealNVP BatchNorm layer.

    Returns (y, log_abs_det_jacobian_row, new_running_mean, new_running_var).
    The log|det J| is the (D,) row; the original module's .expand_as(x) is a
    broadcast left to the consumer (materializing it here would re-add a full
    B*D HBM write that the kernel was designed to avoid).
    """
    b, d = x.shape
    itemsize = x.dtype.itemsize
    eps = float(eps)
    # B=1 guard: var=0 instead of PyTorch's NaN from unbiased variance.
    inv_denom = 1.0 / float(max(b - 1, 1))

    log_gamma2 = log_gamma.reshape(1, d).astype(jnp.float32)
    beta2 = beta.reshape(1, d).astype(jnp.float32)

    tile_d = None if force_two_pass else _choose_tile_d(b, d, itemsize)

    if tile_d is not None:
        # ---------------- single-pass, feature-tiled ----------------
        grid_d = pl.cdiv(d, tile_d)
        kernel = functools.partial(_batchnorm_kernel, eps=eps, inv_denom=inv_denom)
        y, ladj_row, batch_mean, batch_var = pl.pallas_call(
            kernel,
            out_shape=(
                jax.ShapeDtypeStruct((b, d), x.dtype),      # y
                jax.ShapeDtypeStruct((1, d), jnp.float32),  # ladj row
                jax.ShapeDtypeStruct((1, d), jnp.float32),  # batch mean
                jax.ShapeDtypeStruct((1, d), jnp.float32),  # batch var (unbiased)
            ),
            grid_spec=pltpu.PrefetchScalarGridSpec(
                num_scalar_prefetch=0,
                grid=(grid_d,),
                in_specs=[
                    pl.BlockSpec((b, tile_d), lambda j: (0, j)),
                    pl.BlockSpec((1, tile_d), lambda j: (0, j)),
                    pl.BlockSpec((1, tile_d), lambda j: (0, j)),
                ],
                out_specs=[
                    pl.BlockSpec((b, tile_d), lambda j: (0, j)),
                    pl.BlockSpec((1, tile_d), lambda j: (0, j)),
                    pl.BlockSpec((1, tile_d), lambda j: (0, j)),
                    pl.BlockSpec((1, tile_d), lambda j: (0, j)),
                ],
            ),
            compiler_params=pltpu.CompilerParams(
                dimension_semantics=("parallel",),
                vmem_limit_bytes=_VMEM_LIMIT),
            cost_estimate=pl.CostEstimate(
                flops=7 * b * d,
                transcendentals=3 * d,
                bytes_accessed=2 * b * d * itemsize + 6 * d * 4),
        )(x, log_gamma2, beta2)

        batch_mean = batch_mean.reshape(d)
        batch_var = batch_var.reshape(d)
        ladj_row = ladj_row.reshape(d)
    else:
        # ---------------- two-pass, B-tiled (large batches) ----------------
        tile_b, tile_d2 = _choose_two_pass_tiles(b, d, itemsize)
        if two_pass_tile_b is not None:      # test hook: must be mult. of 8 or == b
            tile_b = two_pass_tile_b
        grid_d = pl.cdiv(d, tile_d2)
        grid_b = pl.cdiv(b, tile_b)

        stats = functools.partial(_stats_kernel, batch=b, tile_b=tile_b)
        sum_x, sum_x2 = pl.pallas_call(
            stats,
            out_shape=(jax.ShapeDtypeStruct((1, d), jnp.float32),
                       jax.ShapeDtypeStruct((1, d), jnp.float32)),
            grid_spec=pltpu.PrefetchScalarGridSpec(
                num_scalar_prefetch=0,
                grid=(grid_d, grid_b),                       # reduction axis last
                in_specs=[pl.BlockSpec((tile_b, tile_d2), lambda j, i: (i, j))],
                out_specs=[pl.BlockSpec((1, tile_d2), lambda j, i: (0, j)),
                           pl.BlockSpec((1, tile_d2), lambda j, i: (0, j))],
            ),
            compiler_params=pltpu.CompilerParams(
                dimension_semantics=("parallel", "arbitrary"),
                vmem_limit_bytes=_VMEM_LIMIT),
            cost_estimate=pl.CostEstimate(
                flops=3 * b * d, transcendentals=0,
                bytes_accessed=b * d * itemsize + 2 * d * 4),
        )(x)

        batch_mean = (sum_x.reshape(d) * (1.0 / b))
        # E[x^2] - mean^2 in f32; clamp tiny negative cancellation error.
        batch_var = jnp.maximum(
            (sum_x2.reshape(d) - b * batch_mean * batch_mean) * inv_denom, 0.0)
        inv_std = jax.lax.rsqrt(batch_var + eps)
        lg = log_gamma.astype(jnp.float32)
        ladj_row = lg - 0.5 * jnp.log(batch_var + eps)

        scale_row = (jnp.exp(lg) * inv_std)
        shift_row = beta.astype(jnp.float32) - batch_mean * scale_row
        scale2 = scale_row.reshape(1, d)
        shift2 = shift_row.reshape(1, d)

        y = pl.pallas_call(
            _apply_kernel,
            out_shape=jax.ShapeDtypeStruct((b, d), x.dtype),
            grid_spec=pltpu.PrefetchScalarGridSpec(
                num_scalar_prefetch=0,
                grid=(grid_d, grid_b),
                in_specs=[
                    pl.BlockSpec((tile_b, tile_d2), lambda j, i: (i, j)),
                    pl.BlockSpec((1, tile_d2), lambda j, i: (0, j)),
                    pl.BlockSpec((1, tile_d2), lambda j, i: (0, j)),
                ],
                out_specs=pl.BlockSpec((tile_b, tile_d2), lambda j, i: (i, j)),
            ),
            compiler_params=pltpu.CompilerParams(
                dimension_semantics=("parallel", "parallel"),
                vmem_limit_bytes=_VMEM_LIMIT),
            cost_estimate=pl.CostEstimate(
                flops=2 * b * d, transcendentals=0,
                bytes_accessed=2 * b * d * itemsize + 2 * d * 4),
        )(x, scale2, shift2)

    # running.mul_(momentum).add_(batch_stat * (1 - momentum)) -- (D,) vectors.
    new_running_mean = running_mean * momentum + \
        batch_mean.astype(running_mean.dtype) * (1.0 - momentum)
    new_running_var = running_var * momentum + \
        batch_var.astype(running_var.dtype) * (1.0 - momentum)

    return y, ladj_row, new_running_mean, new_running_var


# --------------------------------------------------------------------------
# Reference + test.
# --------------------------------------------------------------------------
def _reference_forward(x, log_gamma, beta, eps=1e-5):
    mean = jnp.mean(x, axis=0)
    var = jnp.var(x, axis=0, ddof=1)
    x_hat = (x - mean) / jnp.sqrt(var + eps)
    y = jnp.exp(log_gamma) * x_hat + beta
    ladj = log_gamma - 0.5 * jnp.log(var + eps)
    return y, ladj, mean, var


if __name__ == "__main__":
    key = jax.random.PRNGKey(0)

    def check(b, d, **kw):
        kx, kg, kb = jax.random.split(jax.random.fold_in(key, b * 1000 + d), 3)
        x = jax.random.normal(kx, (b, d), dtype=jnp.float32)
        log_gamma = 0.1 * jax.random.normal(kg, (d,), dtype=jnp.float32)
        beta = 0.1 * jax.random.normal(kb, (d,), dtype=jnp.float32)
        rm = jnp.zeros((d,), jnp.float32)
        rv = jnp.ones((d,), jnp.float32)

        y, ladj_row, nrm, nrv = batchnorm_forward(x, log_gamma, beta, rm, rv, **kw)
        jax.block_until_ready((y, ladj_row, nrm, nrv))

        y_ref, ladj_ref, mean_ref, var_ref = _reference_forward(x, log_gamma, beta)
        assert jnp.allclose(y, y_ref, atol=1e-4, rtol=1e-4), (b, d, "y mismatch")
        assert jnp.allclose(ladj_row, ladj_ref, atol=1e-4, rtol=1e-4), (b, d, "ladj")
        # original module semantics: ladj.expand_as(x) (trivial broadcast at consumer)
        assert jnp.allclose(jnp.broadcast_to(ladj_row, x.shape),
                            jnp.broadcast_to(ladj_ref, x.shape),
                            atol=1e-4, rtol=1e-4), (b, d, "ladj expand")
        assert jnp.allclose(nrm, rm * 0.9 + mean_ref * 0.1, atol=1e-4, rtol=1e-4), \
            (b, d, "running_mean")
        assert jnp.allclose(nrv, rv * 0.9 + var_ref * 0.1, atol=1e-4, rtol=1e-4), \
            (b, d, "running_var")

    # Small shapes consistent with a flow input (batch, input_size).
    check(8, 32)                                       # single-pass, 1 feature tile
    check(16, 384)                                     # single-pass, 3 feature tiles
    check(20, 384, force_two_pass=True, two_pass_tile_b=8)  # two-pass, ragged batch

    print("KERNEL_OK")
</pallas_src>

<mosaic_0001>
module attributes {stable_mosaic.version = 11 : i64} {
  func.func @_batchnorm_kernel(%arg0: i32, %arg1: memref<8x32xf32, #tpu.memory_space<vmem>>, %arg2: memref<1x32xf32, #tpu.memory_space<vmem>>, %arg3: memref<1x32xf32, #tpu.memory_space<vmem>>, %arg4: memref<8x32xf32, #tpu.memory_space<vmem>>, %arg5: memref<1x32xf32, #tpu.memory_space<vmem>>, %arg6: memref<1x32xf32, #tpu.memory_space<vmem>>, %arg7: memref<1x32xf32, #tpu.memory_space<vmem>>) attributes {dimension_semantics = [#tpu.dimension_semantics<parallel>], iteration_bounds = array<i64: 1>, scalar_prefetch = 0 : i64, scratch_operands = 0 : i64, tpu.core_type = #tpu.core_type<tc>, window_params = [{transform_indices = @transform_0, window_bounds = array<i64: 8, 32>}, {transform_indices = @transform_1, window_bounds = array<i64: 1, 32>}, {transform_indices = @transform_2, window_bounds = array<i64: 1, 32>}, {transform_indices = @transform_3, window_bounds = array<i64: 8, 32>}, {transform_indices = @transform_4, window_bounds = array<i64: 1, 32>}, {transform_indices = @transform_5, window_bounds = array<i64: 1, 32>}, {transform_indices = @transform_6, window_bounds = array<i64: 1, 32>}]} {
    %c0 = arith.constant 0 : index
    %c0_0 = arith.constant 0 : index
    %0 = vector.load %arg1[%c0, %c0_0] : memref<8x32xf32, #tpu.memory_space<vmem>>, vector<8x32xf32>
    %cst = arith.constant dense<0.000000e+00> : vector<32xf32>
    %1 = vector.multi_reduction <add>, %0, %cst [0] : vector<8x32xf32> to vector<32xf32>
    %2 = vector.shape_cast %1 : vector<32xf32> to vector<1x32xf32>
    %cst_1 = arith.constant 8.000000e+00 : f32
    %3 = vector.broadcast %cst_1 : f32 to vector<1x32xf32>
    %4 = arith.divf %2, %3 : vector<1x32xf32>
    %5 = vector.broadcast %4 : vector<1x32xf32> to vector<8x32xf32>
    %6 = arith.subf %0, %5 : vector<8x32xf32>
    %7 = arith.mulf %6, %6 : vector<8x32xf32>
    %cst_2 = arith.constant dense<0.000000e+00> : vector<32xf32>
    %8 = vector.multi_reduction <add>, %7, %cst_2 [0] : vector<8x32xf32> to vector<32xf32>
    %9 = vector.shape_cast %8 : vector<32xf32> to vector<1x32xf32>
    %cst_3 = arith.constant 0.142857149 : f32
    %10 = vector.broadcast %cst_3 : f32 to vector<1x32xf32>
    %11 = arith.mulf %9, %10 : vector<1x32xf32>
    %cst_4 = arith.constant 9.99999974E-6 : f32
    %12 = vector.broadcast %cst_4 : f32 to vector<1x32xf32>
    %13 = arith.addf %11, %12 : vector<1x32xf32>
    %14 = math.rsqrt %13 : vector<1x32xf32>
    %c0_5 = arith.constant 0 : index
    %c0_6 = arith.constant 0 : index
    %15 = vector.load %arg2[%c0_5, %c0_6] : memref<1x32xf32, #tpu.memory_space<vmem>>, vector<1x32xf32>
    %c0_7 = arith.constant 0 : index
    %c0_8 = arith.constant 0 : index
    %16 = vector.load %arg3[%c0_7, %c0_8] : memref<1x32xf32, #tpu.memory_space<vmem>>, vector<1x32xf32>
    %17 = math.exp %15 : vector<1x32xf32>
    %18 = vector.broadcast %14 : vector<1x32xf32> to vector<8x32xf32>
    %19 = arith.mulf %6, %18 : vector<8x32xf32>
    %20 = vector.broadcast %17 : vector<1x32xf32> to vector<8x32xf32>
    %21 = arith.mulf %20, %19 : vector<8x32xf32>
    %22 = vector.broadcast %16 : vector<1x32xf32> to vector<8x32xf32>
    %23 = arith.addf %21, %22 : vector<8x32xf32>
    %c0_9 = arith.constant 0 : index
    %c0_10 = arith.constant 0 : index
    %24 = vector.load %arg4[%c0_9, %c0_10] : memref<8x32xf32, #tpu.memory_space<vmem>>, vector<8x32xf32>
    tpu.vector_store %arg4[%c0_9, %c0_10], %23 {strides = array<i32>} : memref<8x32xf32, #tpu.memory_space<vmem>>, vector<8x32xf32>,
    %cst_11 = arith.constant 9.99999974E-6 : f32
    %25 = vector.broadcast %cst_11 : f32 to vector<1x32xf32>
    %26 = arith.addf %11, %25 : vector<1x32xf32>
    %27 = math.log %26 : vector<1x32xf32>
    %cst_12 = arith.constant 5.000000e-01 : f32
    %28 = vector.broadcast %cst_12 : f32 to vector<1x32xf32>
    %29 = arith.mulf %28, %27 : vector<1x32xf32>
    %30 = arith.subf %15, %29 : vector<1x32xf32>
    %c0_13 = arith.constant 0 : index
    %c0_14 = arith.constant 0 : index
    %31 = vector.load %arg5[%c0_13, %c0_14] : memref<1x32xf32, #tpu.memory_space<vmem>>, vector<1x32xf32>
    tpu.vector_store %arg5[%c0_13, %c0_14], %30 {strides = array<i32>} : memref<1x32xf32, #tpu.memory_space<vmem>>, vector<1x32xf32>,
    %c0_15 = arith.constant 0 : index
    %c0_16 = arith.constant 0 : index
    %32 = vector.load %arg6[%c0_15, %c0_16] : memref<1x32xf32, #tpu.memory_space<vmem>>, vector<1x32xf32>
    tpu.vector_store %arg6[%c0_15, %c0_16], %4 {strides = array<i32>} : memref<1x32xf32, #tpu.memory_space<vmem>>, vector<1x32xf32>,
    %c0_17 = arith.constant 0 : index
    %c0_18 = arith.constant 0 : index
    %33 = vector.load %arg7[%c0_17, %c0_18] : memref<1x32xf32, #tpu.memory_space<vmem>>, vector<1x32xf32>
    tpu.vector_store %arg7[%c0_17, %c0_18], %11 {strides = array<i32>} : memref<1x32xf32, #tpu.memory_space<vmem>>, vector<1x32xf32>,
    return
  }
  func.func @transform_0(%arg0: i32) -> (i32, i32) {
    %c0_i32 = arith.constant 0 : i32
    %c0_i32_0 = arith.constant 0 : i32
    return %c0_i32, %arg0 : i32, i32
  }
  func.func @transform_1(%arg0: i32) -> (i32, i32) {
    %c0_i32 = arith.constant 0 : i32
    %c0_i32_0 = arith.constant 0 : i32
    return %c0_i32, %arg0 : i32, i32
  }
  func.func @transform_2(%arg0: i32) -> (i32, i32) {
    %c0_i32 = arith.constant 0 : i32
    %c0_i32_0 = arith.constant 0 : i32
    return %c0_i32, %arg0 : i32, i32
  }
  func.func @transform_3(%arg0: i32) -> (i32, i32) {
    %c0_i32 = arith.constant 0 : i32
    %c0_i32_0 = arith.constant 0 : i32
    return %c0_i32, %arg0 : i32, i32
  }
  func.func @transform_4(%arg0: i32) -> (i32, i32) {
    %c0_i32 = arith.constant 0 : i32
    %c0_i32_0 = arith.constant 0 : i32
    return %c0_i32, %arg0 : i32, i32
  }
  func.func @transform_5(%arg0: i32) -> (i32, i32) {
    %c0_i32 = arith.constant 0 : i32
    %c0_i32_0 = arith.constant 0 : i32
    return %c0_i32, %arg0 : i32, i32
  }
  func.func @transform_6(%arg0: i32) -> (i32, i32) {
    %c0_i32 = arith.constant 0 : i32
    %c0_i32_0 = arith.constant 0 : i32
    return %c0_i32, %arg0 : i32, i32
  }
}

</mosaic_0001>

<llo_original>
// kernel: tpu_custom_call.1
$region0: #{tpu_custom_call.1}
  #allocation0 [shape = 'u32[]', space=smem, size = 0x4, offset = 0x4, fixed_abs, tag = 'smem constant byte address 0x4 - core index']
  #allocation1 [shape = 'u32[144,128]{1,0:T(1,128)}', space=vmem, size = 0x12000, scoped, tag = 'internal scratch']
  %s0 = inlined_call_operand.hbm [shape: f32[8,32], index: 0, kind: input, shape index: {}]
  %s1 = inlined_call_operand.vmem [shape: f32[1,32], index: 1, kind: input, shape index: {}]
  %s2 = inlined_call_operand.vmem [shape: f32[1,32], index: 2, kind: input, shape index: {}]
  %s3 = inlined_call_operand.hbm [shape: f32[8,32], index: 3, kind: output, shape index: {0}]
  %s4 = inlined_call_operand.hbm [shape: f32[1,32], index: 4, kind: output, shape index: {1}]
  %s5 = inlined_call_operand.hbm [shape: f32[1,32], index: 5, kind: output, shape index: {2}]
  %s6 = inlined_call_operand.hbm [shape: f32[1,32], index: 6, kind: output, shape index: {3}]
  %7 = xla_tuple %s3, %s4, %s5, %s6
  %s8 = sld [smem:[#allocation0]]
  $region50: #{tpu_custom_call.1} parent=0
    _
  %s10 = ssub.s32 1, %s8
  %s11 = scalar_select 0, %s10, %s8
  $region1: #{tpu_custom_call.1} parent=0
    #allocation2 [shape = 'u8[4096]{0}', space=vmem, size = 0x1000, scoped, tag = 'input window, operand 0, single buffered']
    #allocation3 [shape = 's32[1]{0}', space=sflag, size = 0x4, scoped, tag = 'scoped memory for tpu_custom_call.1']
    #allocation4 [shape = 's32[1]{0}', space=sflag, size = 0x4, scoped, tag = 'scoped memory for tpu_custom_call.1']
    #allocation5 [shape = 'u8[4096]{0}', space=vmem, size = 0x1000, scoped, tag = 'output window, operand 0, single buffered']
    #allocation6 [shape = 'u8[512]{0}', space=vmem, size = 0x400, scoped, tag = 'output window, operand 1, single buffered']
    #allocation7 [shape = 's32[1]{0}', space=sflag, size = 0x4, scoped, tag = 'scoped memory for tpu_custom_call.1']
    #allocation8 [shape = 'u8[512]{0}', space=vmem, size = 0x400, scoped, tag = 'output window, operand 2, single buffered']
    #allocation9 [shape = 'u8[512]{0}', space=vmem, size = 0x400, scoped, tag = 'output window, operand 3, single buffered']
    #allocation10 [shape = 's32[1]{0}', space=sflag, size = 0x4, scoped, tag = 'scoped memory for tpu_custom_call.1']
    %12 = vsyncpa [#allocation3], 0
    %13 = vsyncpa [#allocation4], 0
    %14 = vsyncpa [#allocation7], 0
    %15 = vsyncpa [#allocation10], 0
    // Predicated region
    $region2: #{tpu_custom_call.1} parent=1 // pred_check
      _
    $region3: #{tpu_custom_call.1} parent=1 // pred_check_branch
      %17 = sbr.rel (0) target = $region5
    $region4: #{tpu_custom_call.1} parent=1 // pred_region
      %s19 = ssub.s32 128, 128
      %20 = vsyncadd [#allocation3], %s19
      %s22 = sshll.u32 [#allocation2], 4
      %s23 = int_to_ptr.vmem [resolvable:$true] %s22
      %25 = dma.hbm_to_vmem [thread:$0]  %s0, 128, %s23, [#allocation3]
    $region5: #{tpu_custom_call.1} parent=1 // pred_fallthru
      _
    // Predicated region
    $region6: #{tpu_custom_call.1} parent=1 // pred_check
      _
    $region7: #{tpu_custom_call.1} parent=1 // pred_check_branch
      %27 = sbr.rel (0) target = $region9
    $region8: #{tpu_custom_call.1} parent=1 // pred_region
      _
    $region9: #{tpu_custom_call.1} parent=1 // pred_fallthru
      _
    // Predicated region
    $region10: #{tpu_custom_call.1} parent=1 // pred_check
      _
    $region11: #{tpu_custom_call.1} parent=1 // pred_check_branch
      %29 = sbr.rel (0) target = $region13
    $region12: #{tpu_custom_call.1} parent=1 // pred_region
      _
    $region13: #{tpu_custom_call.1} parent=1 // pred_fallthru
      _
    // Predicated region
    $region14: #{tpu_custom_call.1} parent=1 // pred_check
      _
    $region15: #{tpu_custom_call.1} parent=1 // pred_check_branch
      %31 = sbr.rel (0) target = $region17
    $region16: #{tpu_custom_call.1} parent=1 // pred_region
      %32 = dma.done [#allocation3], 128
    $region17: #{tpu_custom_call.1} parent=1 // pred_fallthru
      _
    %v33 = vld [vmem:[#allocation2] sm:$0xff]
    %vm34 = vcmask 261120
    %v35 = vsel %vm34, %v33, 0.0
    %v36 = vrot.slane %v35, 4
    %v37 = vadd.f32 %v35, %v36
    %v38 = vrot.slane %v37, 2
    %v39 = vadd.f32 %v37, %v38
    %v40 = vrot.slane %v39, 1
    %v41 = vadd.f32 %v39, %v40
    %v42 = vrcp.pop 8.0
    %v43 = vmul.f32 %v41, %v42
    %v44 = vsub.f32 %v33, %v43
    %v45 = vmul.f32 %v44, %v44
    %v46 = vsel %vm34, %v45, 0.0
    %v47 = vrot.slane %v46, 4
    %v48 = vadd.f32 %v46, %v47
    %v49 = vrot.slane %v48, 2
    %v50 = vadd.f32 %v48, %v49
    %v51 = vrot.slane %v50, 1
    %v52 = vadd.f32 %v50, %v51
    %v53 = vmul.f32 %v52, 0.14285715
    %v54 = vadd.f32 %v53, 1e-05
    %v55 = vrsqrt.pop %v54
    %v56 = vld [vmem:[%s1] sm:$0x1]
    %v57 = vld [vmem:[%s2] sm:$0x1]
    %v58 = vmul.f32 %v56, 1.442695
    %v59 = vpow.pop %v58
    %v60 = vmul.f32 %v44, %v55
    %v62 = vlaneseq
    %v63 = vshrl.u32 %v62, 7
    %v64 = vsub.s32 0, %v63
    %v65 = vrot.slane %v59, %v64
    %v67 = vmul.f32 %v65, %v60
    %v69 = vlaneseq
    %v70 = vshrl.u32 %v69, 7
    %v71 = vsub.s32 0, %v70
    %v72 = vrot.slane %v57, %v71
    %v74 = vadd.f32 %v67, %v72
    %75 = vst.msk [vmem:[#allocation5] sm:$0xff] %vm34, %v74
    %v76 = vlog2.pop %v54
    %v77 = vmul.f32 %v76, 0.6931472
    %v78 = vmul.f32 %v77, 0.5
    %v79 = vsub.f32 %v56, %v78
    %vm80 = vcmask 253952
    %81 = vst.msk [vmem:[#allocation6] sm:$0x1] %vm80, %v79
    %82 = vst.msk [vmem:[#allocation8] sm:$0x1] %vm80, %v43
    %83 = vst.msk [vmem:[#allocation9] sm:$0x1] %vm80, %v53
    // Predicated region
    $region18: #{tpu_custom_call.1} parent=1 // pred_check
      _
    $region19: #{tpu_custom_call.1} parent=1 // pred_check_branch
      %85 = sbr.rel (0) target = $region21
    $region20: #{tpu_custom_call.1} parent=1 // pred_region
      %s87 = ssub.s32 128, 128
      %88 = vsyncadd [#allocation4], %s87
      %s90 = sshll.u32 [#allocation5], 4
      %s91 = int_to_ptr.vmem [resolvable:$true] %s90
      %93 = dma.vmem_to_hbm [thread:$0]  %s91, 128, %s3, [#allocation4]
    $region21: #{tpu_custom_call.1} parent=1 // pred_fallthru
      _
    // Predicated region
    $region22: #{tpu_custom_call.1} parent=1 // pred_check
      _
    $region23: #{tpu_custom_call.1} parent=1 // pred_check_branch
      %95 = sbr.rel (0) target = $region25
    $region24: #{tpu_custom_call.1} parent=1 // pred_region
      %s97 = ssub.s32 16, 16
      %98 = vsyncadd [#allocation7], %s97
      %s100 = sshll.u32 [#allocation6], 4
      %s101 = int_to_ptr.vmem [resolvable:$true] %s100
      %103 = dma.vmem_to_hbm [thread:$0]  %s101, 16, %s4, [#allocation7]
    $region25: #{tpu_custom_call.1} parent=1 // pred_fallthru
      _
    // Predicated region
    $region26: #{tpu_custom_call.1} parent=1 // pred_check
      _
    $region27: #{tpu_custom_call.1} parent=1 // pred_check_branch
      %105 = sbr.rel (0) target = $region29
    $region28: #{tpu_custom_call.1} parent=1 // pred_region
      %s107 = ssub.s32 16, 16
      %108 = vsyncadd [#allocation7], %s107
      %s110 = sshll.u32 [#allocation8], 4
      %s111 = int_to_ptr.vmem [resolvable:$true] %s110
      %113 = dma.vmem_to_hbm [thread:$0]  %s111, 16, %s5, [#allocation7]
    $region29: #{tpu_custom_call.1} parent=1 // pred_fallthru
      _
    // Predicated region
    $region30: #{tpu_custom_call.1} parent=1 // pred_check
      _
    $region31: #{tpu_custom_call.1} parent=1 // pred_check_branch
      %115 = sbr.rel (0) target = $region33
    $region32: #{tpu_custom_call.1} parent=1 // pred_region
      %s117 = ssub.s32 16, 16
      %118 = vsyncadd [#allocation10], %s117
      %s120 = sshll.u32 [#allocation9], 4
      %s121 = int_to_ptr.vmem [resolvable:$true] %s120
      %123 = dma.vmem_to_hbm [thread:$0]  %s121, 16, %s6, [#allocation10]
    $region33: #{tpu_custom_call.1} parent=1 // pred_fallthru
      _
    // Predicated region
    $region34: #{tpu_custom_call.1} parent=1 // pred_check
      _
    $region35: #{tpu_custom_call.1} parent=1 // pred_check_branch
      %125 = sbr.rel (0) target = $region37
    $region36: #{tpu_custom_call.1} parent=1 // pred_region
      %126 = dma.done [#allocation4], 128
    $region37: #{tpu_custom_call.1} parent=1 // pred_fallthru
      _
    // Predicated region
    $region38: #{tpu_custom_call.1} parent=1 // pred_check
      _
    $region39: #{tpu_custom_call.1} parent=1 // pred_check_branch
      %128 = sbr.rel (0) target = $region41
    $region40: #{tpu_custom_call.1} parent=1 // pred_region
      %129 = dma.done [#allocation7], 16
    $region41: #{tpu_custom_call.1} parent=1 // pred_fallthru
      _
    // Predicated region
    $region42: #{tpu_custom_call.1} parent=1 // pred_check
      _
    $region43: #{tpu_custom_call.1} parent=1 // pred_check_branch
      %131 = sbr.rel (0) target = $region45
    $region44: #{tpu_custom_call.1} parent=1 // pred_region
      %132 = dma.done [#allocation7], 16
    $region45: #{tpu_custom_call.1} parent=1 // pred_fallthru
      _
    // Predicated region
    $region46: #{tpu_custom_call.1} parent=1 // pred_check
      _
    $region47: #{tpu_custom_call.1} parent=1 // pred_check_branch
      %134 = sbr.rel (0) target = $region49
    $region48: #{tpu_custom_call.1} parent=1 // pred_region
      %135 = dma.done [#allocation10], 16
    $region49: #{tpu_custom_call.1} parent=1 // pred_fallthru
      _
    %136 = vsyncpa [#allocation3], 1
    %137 = vsyncpa [#allocation4], 1
    %138 = vsyncpa [#allocation7], 1
    %139 = vsyncpa [#allocation10], 1

</llo_original>
